<compile_context>
chip_gen: v7x
topology: tpu7x:2x2x1
jax: 0.10.0
libtpu: 0.0.40
codegen_flags: <defaults>
</compile_context>

<pallas_src>
import functools

import jax
import jax.numpy as jnp
import numpy as np
from jax.experimental import pallas as pl
from jax.experimental.pallas import tpu as pltpu


def seq_rnn_kernel(x_ref, wih_t_ref, whh_t_ref, bfold_ref, wl_t_ref, bl_ref,
                   out_ref, *, B, T):
    # x_ref is time-major (T*B, V); rows [t*B, (t+1)*B) are timestep t.
    # Input projection for all timesteps at once on the MXU, biases folded in.
    xproj = jnp.dot(x_ref[...], wih_t_ref[...],
                    preferred_element_type=jnp.float32)
    xproj = xproj + bfold_ref[...]                      # broadcast (1, H)

    # Load the recurrent weight once; it stays in vregs across all T steps.
    whh_t = whh_t_ref[...]                              # (H, H), already W_hh^T

    # h_0 = 0  ->  first step reduces to tanh of the input projection.
    h = jnp.tanh(xproj[0:B, :])

    # Recurrent loop (T small & static -> unrolled); h lives in vregs, no
    # VMEM round-trip on the serial dependence chain.
    for t in range(1, T):
        rec = jnp.dot(h, whh_t, preferred_element_type=jnp.float32)
        h = jnp.tanh(xproj[t * B:(t + 1) * B, :] + rec)

    # Linear head on the final hidden state, then softmax over dim=1.
    logits = jnp.dot(h, wl_t_ref[...], preferred_element_type=jnp.float32)
    logits = logits + bl_ref[...]
    m = jnp.max(logits, axis=1, keepdims=True)
    e = jnp.exp(logits - m)
    # exact reciprocal kept so the rtol=1e-4 / atol=1e-5 check holds
    out_ref[...] = e * pl.reciprocal(jnp.sum(e, axis=1, keepdims=True),
                                     approx=False)


def seq_rnn_forward(x, w_ih, w_hh, b_ih, b_hh, w_l, b_l):
    B, T, V = x.shape
    H = w_hh.shape[0]
    O = w_l.shape[0]

    # Host-side (XLA) layout plumbing: time-major 2-D x, pre-transposed
    # weights, folded biases as (1, H)/(1, O) row vectors.
    x_tm = jnp.transpose(x, (1, 0, 2)).reshape(T * B, V)
    b_fold = (b_ih + b_hh).reshape(1, H)

    vmem = pl.BlockSpec(memory_space=pltpu.MemorySpace.VMEM)
    kernel = functools.partial(seq_rnn_kernel, B=B, T=T)

    # Shapes are tiny (few KB total) -> one monolithic call, everything
    # resident in VMEM; no grid needed at these sizes.
    # TODO(synk): for large B, grid over batch with "parallel" semantics
    # (2 TCs on v7x) and pad H/V/O to lane multiples of 128.
    return pl.pallas_call(
        kernel,
        out_shape=jax.ShapeDtypeStruct((B, O), jnp.float32),
        in_specs=[vmem] * 6,
        out_specs=vmem,
    )(x_tm, w_ih.T, w_hh.T, b_fold, w_l.T, b_l.reshape(1, O))


def seq_rnn_reference(x, w_ih, w_hh, b_ih, b_hh, w_l, b_l):
    B, T, V = x.shape
    H = w_hh.shape[0]
    h = jnp.zeros((B, H), jnp.float32)
    for t in range(T):
        h = jnp.tanh(x[:, t, :] @ w_ih.T + b_ih + h @ w_hh.T + b_hh)
    logits = h @ w_l.T + b_l
    return jax.nn.softmax(logits, axis=1)


if __name__ == "__main__":
    # Model sizes (small, consistent with the module's forward: batch=1 because
    # h0 = torch.zeros(1, 1, hidden_size) hard-codes batch size 1 in PyTorch).
    B, T = 1, 8
    vocab_size, hidden_size, output_size = 16, 32, 5

    key = jax.random.PRNGKey(0)
    k_x, k_wih, k_whh, k_bih, k_bhh, k_wl, k_bl = jax.random.split(key, 7)

    # Deterministic parameter init (PyTorch-style uniform(-1/sqrt(H), 1/sqrt(H))).
    bound = 1.0 / np.sqrt(hidden_size)
    x = jax.random.normal(k_x, (B, T, vocab_size), jnp.float32)
    w_ih = jax.random.uniform(k_wih, (hidden_size, vocab_size), jnp.float32, -bound, bound)
    w_hh = jax.random.uniform(k_whh, (hidden_size, hidden_size), jnp.float32, -bound, bound)
    b_ih = jax.random.uniform(k_bih, (hidden_size,), jnp.float32, -bound, bound)
    b_hh = jax.random.uniform(k_bhh, (hidden_size,), jnp.float32, -bound, bound)
    w_l = jax.random.uniform(k_wl, (output_size, hidden_size), jnp.float32, -bound, bound)
    b_l = jax.random.uniform(k_bl, (output_size,), jnp.float32, -bound, bound)

    out = seq_rnn_forward(x, w_ih, w_hh, b_ih, b_hh, w_l, b_l)
    out = jax.block_until_ready(out)

    ref = seq_rnn_reference(x, w_ih, w_hh, b_ih, b_hh, w_l, b_l)
    np.testing.assert_allclose(np.asarray(out), np.asarray(ref), rtol=1e-4, atol=1e-5)

    print("KERNEL_OK")
</pallas_src>

<mosaic_0001>
module attributes {stable_mosaic.version = 11 : i64} {
  func.func @seq_rnn_kernel(%arg0: memref<8x16xf32, #tpu.memory_space<vmem>>, %arg1: memref<16x32xf32, #tpu.memory_space<vmem>>, %arg2: memref<32x32xf32, #tpu.memory_space<vmem>>, %arg3: memref<1x32xf32, #tpu.memory_space<vmem>>, %arg4: memref<32x5xf32, #tpu.memory_space<vmem>>, %arg5: memref<1x5xf32, #tpu.memory_space<vmem>>, %arg6: memref<1x5xf32, #tpu.memory_space<vmem>>) attributes {dimension_semantics = [], scalar_prefetch = 0 : i64, scratch_operands = 0 : i64, tpu.core_type = #tpu.core_type<tc>} {
    %c0 = arith.constant 0 : index
    %c0_0 = arith.constant 0 : index
    %0 = vector.load %arg0[%c0, %c0_0] : memref<8x16xf32, #tpu.memory_space<vmem>>, vector<8x16xf32>
    %c0_1 = arith.constant 0 : index
    %c0_2 = arith.constant 0 : index
    %1 = vector.load %arg1[%c0_1, %c0_2] : memref<16x32xf32, #tpu.memory_space<vmem>>, vector<16x32xf32>
    %cst = arith.constant dense<0.000000e+00> : vector<8x32xf32>
    %2 = tpu.matmul %0, %1, %cst {dimension_numbers = #tpu.dot_dimension_numbers<[1], [0], [0], [1], [0, 0, 1, 1], [], []>} : vector<8x16xf32>, vector<16x32xf32>, vector<8x32xf32> -> vector<8x32xf32>
    %c0_3 = arith.constant 0 : index
    %c0_4 = arith.constant 0 : index
    %3 = vector.load %arg3[%c0_3, %c0_4] : memref<1x32xf32, #tpu.memory_space<vmem>>, vector<1x32xf32>
    %4 = vector.broadcast %3 : vector<1x32xf32> to vector<8x32xf32>
    %5 = arith.addf %2, %4 : vector<8x32xf32>
    %c0_5 = arith.constant 0 : index
    %c0_6 = arith.constant 0 : index
    %6 = vector.load %arg2[%c0_5, %c0_6] : memref<32x32xf32, #tpu.memory_space<vmem>>, vector<32x32xf32>
    %7 = vector.extract_strided_slice %5 {offsets = [0, 0], sizes = [1, 32], strides = [1, 1]} : vector<8x32xf32> to vector<1x32xf32>
    %8 = math.tanh %7 : vector<1x32xf32>
    %cst_7 = arith.constant dense<0.000000e+00> : vector<1x32xf32>
    %9 = tpu.matmul %8, %6, %cst_7 {dimension_numbers = #tpu.dot_dimension_numbers<[1], [0], [0], [1], [0, 0, 1, 1], [], []>} : vector<1x32xf32>, vector<32x32xf32>, vector<1x32xf32> -> vector<1x32xf32>
    %10 = vector.extract_strided_slice %5 {offsets = [1, 0], sizes = [1, 32], strides = [1, 1]} : vector<8x32xf32> to vector<1x32xf32>
    %11 = arith.addf %10, %9 : vector<1x32xf32>
    %12 = math.tanh %11 : vector<1x32xf32>
    %cst_8 = arith.constant dense<0.000000e+00> : vector<1x32xf32>
    %13 = tpu.matmul %12, %6, %cst_8 {dimension_numbers = #tpu.dot_dimension_numbers<[1], [0], [0], [1], [0, 0, 1, 1], [], []>} : vector<1x32xf32>, vector<32x32xf32>, vector<1x32xf32> -> vector<1x32xf32>
    %14 = vector.extract_strided_slice %5 {offsets = [2, 0], sizes = [1, 32], strides = [1, 1]} : vector<8x32xf32> to vector<1x32xf32>
    %15 = arith.addf %14, %13 : vector<1x32xf32>
    %16 = math.tanh %15 : vector<1x32xf32>
    %cst_9 = arith.constant dense<0.000000e+00> : vector<1x32xf32>
    %17 = tpu.matmul %16, %6, %cst_9 {dimension_numbers = #tpu.dot_dimension_numbers<[1], [0], [0], [1], [0, 0, 1, 1], [], []>} : vector<1x32xf32>, vector<32x32xf32>, vector<1x32xf32> -> vector<1x32xf32>
    %18 = vector.extract_strided_slice %5 {offsets = [3, 0], sizes = [1, 32], strides = [1, 1]} : vector<8x32xf32> to vector<1x32xf32>
    %19 = arith.addf %18, %17 : vector<1x32xf32>
    %20 = math.tanh %19 : vector<1x32xf32>
    %cst_10 = arith.constant dense<0.000000e+00> : vector<1x32xf32>
    %21 = tpu.matmul %20, %6, %cst_10 {dimension_numbers = #tpu.dot_dimension_numbers<[1], [0], [0], [1], [0, 0, 1, 1], [], []>} : vector<1x32xf32>, vector<32x32xf32>, vector<1x32xf32> -> vector<1x32xf32>
    %22 = vector.extract_strided_slice %5 {offsets = [4, 0], sizes = [1, 32], strides = [1, 1]} : vector<8x32xf32> to vector<1x32xf32>
    %23 = arith.addf %22, %21 : vector<1x32xf32>
    %24 = math.tanh %23 : vector<1x32xf32>
    %cst_11 = arith.constant dense<0.000000e+00> : vector<1x32xf32>
    %25 = tpu.matmul %24, %6, %cst_11 {dimension_numbers = #tpu.dot_dimension_numbers<[1], [0], [0], [1], [0, 0, 1, 1], [], []>} : vector<1x32xf32>, vector<32x32xf32>, vector<1x32xf32> -> vector<1x32xf32>
    %26 = vector.extract_strided_slice %5 {offsets = [5, 0], sizes = [1, 32], strides = [1, 1]} : vector<8x32xf32> to vector<1x32xf32>
    %27 = arith.addf %26, %25 : vector<1x32xf32>
    %28 = math.tanh %27 : vector<1x32xf32>
    %cst_12 = arith.constant dense<0.000000e+00> : vector<1x32xf32>
    %29 = tpu.matmul %28, %6, %cst_12 {dimension_numbers = #tpu.dot_dimension_numbers<[1], [0], [0], [1], [0, 0, 1, 1], [], []>} : vector<1x32xf32>, vector<32x32xf32>, vector<1x32xf32> -> vector<1x32xf32>
    %30 = vector.extract_strided_slice %5 {offsets = [6, 0], sizes = [1, 32], strides = [1, 1]} : vector<8x32xf32> to vector<1x32xf32>
    %31 = arith.addf %30, %29 : vector<1x32xf32>
    %32 = math.tanh %31 : vector<1x32xf32>
    %cst_13 = arith.constant dense<0.000000e+00> : vector<1x32xf32>
    %33 = tpu.matmul %32, %6, %cst_13 {dimension_numbers = #tpu.dot_dimension_numbers<[1], [0], [0], [1], [0, 0, 1, 1], [], []>} : vector<1x32xf32>, vector<32x32xf32>, vector<1x32xf32> -> vector<1x32xf32>
    %34 = vector.extract_strided_slice %5 {offsets = [7, 0], sizes = [1, 32], strides = [1, 1]} : vector<8x32xf32> to vector<1x32xf32>
    %35 = arith.addf %34, %33 : vector<1x32xf32>
    %36 = math.tanh %35 : vector<1x32xf32>
    %c0_14 = arith.constant 0 : index
    %c0_15 = arith.constant 0 : index
    %37 = vector.load %arg4[%c0_14, %c0_15] : memref<32x5xf32, #tpu.memory_space<vmem>>, vector<32x5xf32>
    %cst_16 = arith.constant dense<0.000000e+00> : vector<1x5xf32>
    %38 = tpu.matmul %36, %37, %cst_16 {dimension_numbers = #tpu.dot_dimension_numbers<[1], [0], [0], [1], [0, 0, 1, 1], [], []>} : vector<1x32xf32>, vector<32x5xf32>, vector<1x5xf32> -> vector<1x5xf32>
    %c0_17 = arith.constant 0 : index
    %c0_18 = arith.constant 0 : index
    %39 = vector.load %arg5[%c0_17, %c0_18] : memref<1x5xf32, #tpu.memory_space<vmem>>, vector<1x5xf32>
    %40 = arith.addf %38, %39 : vector<1x5xf32>
    %cst_19 = arith.constant dense<0xFF800000> : vector<1xf32>
    %41 = vector.multi_reduction <maximumf>, %40, %cst_19 [1] : vector<1x5xf32> to vector<1xf32>
    %42 = vector.shape_cast %41 : vector<1xf32> to vector<1x1xf32>
    %43 = vector.broadcast %42 : vector<1x1xf32> to vector<1x5xf32>
    %44 = arith.subf %40, %43 : vector<1x5xf32>
    %45 = math.exp %44 : vector<1x5xf32>
    %cst_20 = arith.constant dense<0.000000e+00> : vector<1xf32>
    %46 = vector.multi_reduction <add>, %45, %cst_20 [1] : vector<1x5xf32> to vector<1xf32>
    %47 = vector.shape_cast %46 : vector<1xf32> to vector<1x1xf32>
    %48 = tpu.reciprocal %47 : vector<1x1xf32> -> vector<1x1xf32>
    %49 = vector.broadcast %48 : vector<1x1xf32> to vector<1x5xf32>
    %50 = arith.mulf %45, %49 : vector<1x5xf32>
    %c0_21 = arith.constant 0 : index
    %c0_22 = arith.constant 0 : index
    %51 = vector.load %arg6[%c0_21, %c0_22] : memref<1x5xf32, #tpu.memory_space<vmem>>, vector<1x5xf32>
    tpu.vector_store %arg6[%c0_21, %c0_22], %50 {strides = array<i32>} : memref<1x5xf32, #tpu.memory_space<vmem>>, vector<1x5xf32>,
    return
  }
}

</mosaic_0001>

<llo_original>
// kernel: tpu_custom_call.1
$region0: #{tpu_custom_call.1}
  #allocation0 [shape = 'u32[]', space=smem, size = 0x4, offset = 0x4, fixed_abs, tag = 'smem constant byte address 0x4 - core index']
  #allocation1 [shape = 'u32[144,128]{1,0:T(1,128)}', space=vmem, size = 0x12000, scoped, tag = 'internal scratch']
  %s0 = inlined_call_operand.vmem [shape: f32[8,16], index: 0, kind: input, shape index: {}]
  %s1 = inlined_call_operand.hbm [shape: f32[16,32], index: 1, kind: input, shape index: {}]
  %s2 = inlined_call_operand.vmem [shape: f32[32,32], index: 2, kind: input, shape index: {}]
  %s3 = inlined_call_operand.vmem [shape: f32[1,32], index: 3, kind: input, shape index: {}]
  %s4 = inlined_call_operand.vmem [shape: f32[32,5], index: 4, kind: input, shape index: {}]
  %s5 = inlined_call_operand.vmem [shape: f32[1,5], index: 5, kind: input, shape index: {}]
  %s6 = inlined_call_operand.hbm [shape: f32[1,5], index: 6, kind: output, shape index: {}]
  %s7 = sld [smem:[#allocation0]]
  $region38: #{tpu_custom_call.1} parent=0
    _
  %s9 = ssub.s32 1, %s7
  %s10 = scalar_select 0, %s9, %s7
  $region1: #{tpu_custom_call.1} parent=0
    #allocation2 [shape = 'u8[8192]{0}', space=vmem, size = 0x2000, scoped, tag = 'input window, operand 1, single buffered']
    #allocation3 [shape = 's32[1]{0}', space=sflag, size = 0x4, scoped, tag = 'scoped memory for tpu_custom_call.1']
    #allocation4 [shape = 's32[1]{0}', space=sflag, size = 0x4, scoped, tag = 'scoped memory for tpu_custom_call.1']
    #allocation5 [shape = 'u8[512]{0}', space=vmem, size = 0x400, scoped, tag = 'output window, operand 0, single buffered']
    %11 = vsyncpa [#allocation3], 0
    %12 = vsyncpa [#allocation4], 0
    // Predicated region
    $region2: #{tpu_custom_call.1} parent=1 // pred_check
      _
    $region3: #{tpu_custom_call.1} parent=1 // pred_check_branch
      %14 = sbr.rel (0) target = $region5
    $region4: #{tpu_custom_call.1} parent=1 // pred_region
      _
    $region5: #{tpu_custom_call.1} parent=1 // pred_fallthru
      _
    // Predicated region
    $region6: #{tpu_custom_call.1} parent=1 // pred_check
      _
    $region7: #{tpu_custom_call.1} parent=1 // pred_check_branch
      %16 = sbr.rel (0) target = $region9
    $region8: #{tpu_custom_call.1} parent=1 // pred_region
      %s18 = ssub.s32 256, 256
      %19 = vsyncadd [#allocation3], %s18
      %s20 = sshll.u32 [#allocation2], 4
      %s21 = int_to_ptr.vmem [resolvable:$true] %s20
      %26 = dma.hbm_to_vmem [thread:$0]  %s1, 256, %s21, [#allocation3], 128, 128, 8
    $region9: #{tpu_custom_call.1} parent=1 // pred_fallthru
      _
    // Predicated region
    $region10: #{tpu_custom_call.1} parent=1 // pred_check
      _
    $region11: #{tpu_custom_call.1} parent=1 // pred_check_branch
      %28 = sbr.rel (0) target = $region13
    $region12: #{tpu_custom_call.1} parent=1 // pred_region
      _
    $region13: #{tpu_custom_call.1} parent=1 // pred_fallthru
      _
    // Predicated region
    $region14: #{tpu_custom_call.1} parent=1 // pred_check
      _
    $region15: #{tpu_custom_call.1} parent=1 // pred_check_branch
      %30 = sbr.rel (0) target = $region17
    $region16: #{tpu_custom_call.1} parent=1 // pred_region
      _
    $region17: #{tpu_custom_call.1} parent=1 // pred_fallthru
      _
    // Predicated region
    $region18: #{tpu_custom_call.1} parent=1 // pred_check
      _
    $region19: #{tpu_custom_call.1} parent=1 // pred_check_branch
      %32 = sbr.rel (0) target = $region21
    $region20: #{tpu_custom_call.1} parent=1 // pred_region
      _
    $region21: #{tpu_custom_call.1} parent=1 // pred_fallthru
      _
    // Predicated region
    $region22: #{tpu_custom_call.1} parent=1 // pred_check
      _
    $region23: #{tpu_custom_call.1} parent=1 // pred_check_branch
      %34 = sbr.rel (0) target = $region25
    $region24: #{tpu_custom_call.1} parent=1 // pred_region
      _
    $region25: #{tpu_custom_call.1} parent=1 // pred_fallthru
      _
    // Predicated region
    $region26: #{tpu_custom_call.1} parent=1 // pred_check
      _
    $region27: #{tpu_custom_call.1} parent=1 // pred_check_branch
      %36 = sbr.rel (0) target = $region29
    $region28: #{tpu_custom_call.1} parent=1 // pred_region
      %37 = dma.done [#allocation3], 256
    $region29: #{tpu_custom_call.1} parent=1 // pred_fallthru
      _
    %v38 = vld [vmem:[%s0] sm:$0xff]
    %v39 = vld [vmem:[#allocation2] sm:$0xff]
    %v40 = vld [vmem:[#allocation2 + $0x8] sm:$0xff]
    %v41 = vld [vmem:[%s3] sm:$0x1]
    %v43 = vlaneseq
    %v44 = vshrl.u32 %v43, 7
    %v45 = vsub.s32 0, %v44
    %v46 = vrot.slane %v41, %v45
    %vm48 = vcmask 130048
    %v50 = vsel %vm48, %v38, 0
    %52 = vmatprep.subr.mxu0 0.0
    %53 = vmatpush1.msra.mxu0 %v39
    %54 = vmatprep.subr.mxu0 0.0
    %55 = vmatpush1.msra.mxu0 %v40
    %56 = vmatprep.subr.mxu0 0.0
    %57 = vmatpush1.msra.mxu0 0.0
    %58 = vmatprep.subr.mxu0 0.0
    %59 = vmatpush1.msra.mxu0 0.0
    %60 = vmatprep.subr.mxu0 0.0
    %61 = vmatpush1.msra.mxu0 0.0
    %62 = vmatprep.subr.mxu0 0.0
    %63 = vmatpush1.msra.mxu0 0.0
    %64 = vmatprep.subr.mxu0 0.0
    %65 = vmatpush1.msra.mxu0 0.0
    %66 = vmatprep.subr.mxu0 0.0
    %67 = vmatpush1.msra.mxu0 0.0
    %68 = vmatprep.subr.mxu0 0.0
    %69 = vmatpush1.msra.mxu0 0.0
    %70 = vmatprep.subr.mxu0 0.0
    %71 = vmatpush1.msra.mxu0 0.0
    %72 = vmatprep.subr.mxu0 0.0
    %73 = vmatpush1.msra.mxu0 0.0
    %74 = vmatprep.subr.mxu0 0.0
    %75 = vmatpush1.msra.mxu0 0.0
    %76 = vmatprep.subr.mxu0 0.0
    %77 = vmatpush1.msra.mxu0 0.0
    %78 = vmatprep.subr.mxu0 0.0
    %79 = vmatpush1.msra.mxu0 0.0
    %80 = vmatprep.subr.mxu0 0.0
    %81 = vmatpush1.msra.mxu0 0.0
    %82 = vmatprep.subr.mxu0 0.0
    %83 = vmatpush1.msra.mxu0 0.0
    %84 = vmatprep.subr.mxu0 0.0
    %85 = vmatpush1.msra.mxu0 0.0
    %86 = vmatprep.subr.mxu0 0.0
    %87 = vmatpush1.msra.mxu0 0.0
    %88 = vmatprep.subr.mxu0 0.0
    %89 = vmatpush1.msra.mxu0 0.0
    %90 = vmatprep.subr.mxu0 0.0
    %91 = vmatpush1.msra.mxu0 0.0
    %92 = vmatprep.subr.mxu0 0.0
    %93 = vmatpush1.msra.mxu0 0.0
    %94 = vmatprep.subr.mxu0 0.0
    %95 = vmatpush1.msra.mxu0 0.0
    %96 = vmatprep.subr.mxu0 0.0
    %97 = vmatpush1.msra.mxu0 0.0
    %98 = vmatprep.subr.mxu0 0.0
    %99 = vmatpush1.msra.mxu0 0.0
    %100 = vmatprep.subr.mxu0 0.0
    %101 = vmatpush1.msra.mxu0 0.0
    %102 = vmatprep.subr.mxu0 0.0
    %103 = vmatpush1.msra.mxu0 0.0
    %104 = vmatprep.subr.mxu0 0.0
    %105 = vmatpush1.msra.mxu0 0.0
    %106 = vmatprep.subr.mxu0 0.0
    %107 = vmatpush1.msra.mxu0 0.0
    %108 = vmatprep.subr.mxu0 0.0
    %109 = vmatpush1.msra.mxu0 0.0
    %110 = vmatprep.subr.mxu0 0.0
    %111 = vmatpush1.msra.mxu0 0.0
    %112 = vmatprep.subr.mxu0 0.0
    %113 = vmatpush1.msra.mxu0 0.0
    %114 = vmatprep.subr.mxu0 0.0
    %115 = vmatpush1.msra.mxu0 0.0
    %116 = vmatprep.mubr.f32.mxu0 0.0
    %117 = vmatmul.mubr.f32.gmra.mrb[0].mxu0 %v50
    %v118 = vpop.f32.mrb[0].mxu0
    %v119 = vadd.f32 %v46, %v118
    %v120 = vpop.f32.mrb[0].mxu0
    %121 = vdwg.mxu0
    %v122 = vld [vmem:[%s2] sm:$0xff]
    %v123 = vld [vmem:[%s2 + $0x8] sm:$0xff]
    %v124 = vld [vmem:[%s2 + $0x10] sm:$0xff]
    %v125 = vld [vmem:[%s2 + $0x18] sm:$0xff]
    %v126 = vtanh.pop %v119
    %vm127 = vcmask 261120
    %v129 = vsel %vm127, %v126, 0
    %131 = vmatprep.subr.mxu0 0.0
    %132 = vmatpush1.msra.mxu0 %v122
    %133 = vmatprep.subr.mxu0 0.0
    %134 = vmatpush1.msra.mxu0 %v123
    %135 = vmatprep.subr.mxu0 0.0
    %136 = vmatpush1.msra.mxu0 %v124
    %137 = vmatprep.subr.mxu0 0.0
    %138 = vmatpush1.msra.mxu0 %v125
    %139 = vmatprep.subr.mxu0 0.0
    %140 = vmatpush1.msra.mxu0 0.0
    %141 = vmatprep.subr.mxu0 0.0
    %142 = vmatpush1.msra.mxu0 0.0
    %143 = vmatprep.subr.mxu0 0.0
    %144 = vmatpush1.msra.mxu0 0.0
    %145 = vmatprep.subr.mxu0 0.0
    %146 = vmatpush1.msra.mxu0 0.0
    %147 = vmatprep.subr.mxu0 0.0
    %148 = vmatpush1.msra.mxu0 0.0
    %149 = vmatprep.subr.mxu0 0.0
    %150 = vmatpush1.msra.mxu0 0.0
    %151 = vmatprep.subr.mxu0 0.0
    %152 = vmatpush1.msra.mxu0 0.0
    %153 = vmatprep.subr.mxu0 0.0
    %154 = vmatpush1.msra.mxu0 0.0
    %155 = vmatprep.subr.mxu0 0.0
    %156 = vmatpush1.msra.mxu0 0.0
    %157 = vmatprep.subr.mxu0 0.0
    %158 = vmatpush1.msra.mxu0 0.0
    %159 = vmatprep.subr.mxu0 0.0
    %160 = vmatpush1.msra.mxu0 0.0
    %161 = vmatprep.subr.mxu0 0.0
    %162 = vmatpush1.msra.mxu0 0.0
    %163 = vmatprep.subr.mxu0 0.0
    %164 = vmatpush1.msra.mxu0 0.0
    %165 = vmatprep.subr.mxu0 0.0
    %166 = vmatpush1.msra.mxu0 0.0
    %167 = vmatprep.subr.mxu0 0.0
    %168 = vmatpush1.msra.mxu0 0.0
    %169 = vmatprep.subr.mxu0 0.0
    %170 = vmatpush1.msra.mxu0 0.0
    %171 = vmatprep.subr.mxu0 0.0
    %172 = vmatpush1.msra.mxu0 0.0
    %173 = vmatprep.subr.mxu0 0.0
    %174 = vmatpush1.msra.mxu0 0.0
    %175 = vmatprep.subr.mxu0 0.0
    %176 = vmatpush1.msra.mxu0 0.0
    %177 = vmatprep.subr.mxu0 0.0
    %178 = vmatpush1.msra.mxu0 0.0
    %179 = vmatprep.subr.mxu0 0.0
    %180 = vmatpush1.msra.mxu0 0.0
    %181 = vmatprep.subr.mxu0 0.0
    %182 = vmatpush1.msra.mxu0 0.0
    %183 = vmatprep.subr.mxu0 0.0
    %184 = vmatpush1.msra.mxu0 0.0
    %185 = vmatprep.subr.mxu0 0.0
    %186 = vmatpush1.msra.mxu0 0.0
    %187 = vmatprep.subr.mxu0 0.0
    %188 = vmatpush1.msra.mxu0 0.0
    %189 = vmatprep.subr.mxu0 0.0
    %190 = vmatpush1.msra.mxu0 0.0
    %191 = vmatprep.subr.mxu0 0.0
    %192 = vmatpush1.msra.mxu0 0.0
    %193 = vmatprep.subr.mxu0 0.0
    %194 = vmatpush1.msra.mxu0 0.0
    %195 = vmatprep.mubr.f32.mxu0 0.0
    %196 = vmatmul.mubr.f32.gmra.mrb[0].mxu0 %v129
    %v197 = vpop.f32.mrb[0].mxu0
    %v198 = vadd.f32 0.0, %v197
    %v199 = vpop.f32.mrb[0].mxu0
    %200 = vdwg.mxu0
    %v202 = vrot.slane %v198, 7
    %v204 = vadd.f32 %v119, %v202
    %v205 = vtanh.pop %v204
    %v207 = vrot.slane %v205, 1
    %v208 = vsel %vm127, %v207, 0
    %210 = vmatprep.subr.mxu0 0.0
    %211 = vmatpush1.msra.mxu0 %v122
    %212 = vmatprep.subr.mxu0 0.0
    %213 = vmatpush1.msra.mxu0 %v123
    %214 = vmatprep.subr.mxu0 0.0
    %215 = vmatpush1.msra.mxu0 %v124
    %216 = vmatprep.subr.mxu0 0.0
    %217 = vmatpush1.msra.mxu0 %v125
    %218 = vmatprep.subr.mxu0 0.0
    %219 = vmatpush1.msra.mxu0 0.0
    %220 = vmatprep.subr.mxu0 0.0
    %221 = vmatpush1.msra.mxu0 0.0
    %222 = vmatprep.subr.mxu0 0.0
    %223 = vmatpush1.msra.mxu0 0.0
    %224 = vmatprep.subr.mxu0 0.0
    %225 = vmatpush1.msra.mxu0 0.0
    %226 = vmatprep.subr.mxu0 0.0
    %227 = vmatpush1.msra.mxu0 0.0
    %228 = vmatprep.subr.mxu0 0.0
    %229 = vmatpush1.msra.mxu0 0.0
    %230 = vmatprep.subr.mxu0 0.0
    %231 = vmatpush1.msra.mxu0 0.0
    %232 = vmatprep.subr.mxu0 0.0
    %233 = vmatpush1.msra.mxu0 0.0
    %234 = vmatprep.subr.mxu0 0.0
    %235 = vmatpush1.msra.mxu0 0.0
    %236 = vmatprep.subr.mxu0 0.0
    %237 = vmatpush1.msra.mxu0 0.0
    %238 = vmatprep.subr.mxu0 0.0
    %239 = vmatpush1.msra.mxu0 0.0
    %240 = vmatprep.subr.mxu0 0.0
    %241 = vmatpush1.msra.mxu0 0.0
    %242 = vmatprep.subr.mxu0 0.0
    %243 = vmatpush1.msra.mxu0 0.0
    %244 = vmatprep.subr.mxu0 0.0
    %245 = vmatpush1.msra.mxu0 0.0
    %246 = vmatprep.subr.mxu0 0.0
    %247 = vmatpush1.msra.mxu0 0.0
    %248 = vmatprep.subr.mxu0 0.0
    %249 = vmatpush1.msra.mxu0 0.0
    %250 = vmatprep.subr.mxu0 0.0
    %251 = vmatpush1.msra.mxu0 0.0
    %252 = vmatprep.subr.mxu0 0.0
    %253 = vmatpush1.msra.mxu0 0.0
    %254 = vmatprep.subr.mxu0 0.0
    %255 = vmatpush1.msra.mxu0 0.0
    %256 = vmatprep.subr.mxu0 0.0
    %257 = vmatpush1.msra.mxu0 0.0
    %258 = vmatprep.subr.mxu0 0.0
    %259 = vmatpush1.msra.mxu0 0.0
    %260 = vmatprep.subr.mxu0 0.0
    %261 = vmatpush1.msra.mxu0 0.0
    %262 = vmatprep.subr.mxu0 0.0
    %263 = vmatpush1.msra.mxu0 0.0
    %264 = vmatprep.subr.mxu0 0.0
    %265 = vmatpush1.msra.mxu0 0.0
    %266 = vmatprep.subr.mxu0 0.0
    %267 = vmatpush1.msra.mxu0 0.0
    %268 = vmatprep.subr.mxu0 0.0
    %269 = vmatpush1.msra.mxu0 0.0
    %270 = vmatprep.subr.mxu0 0.0
    %271 = vmatpush1.msra.mxu0 0.0
    %272 = vmatprep.subr.mxu0 0.0
    %273 = vmatpush1.msra.mxu0 0.0
    %274 = vmatprep.mubr.f32.mxu0 0.0
    %275 = vmatmul.mubr.f32.gmra.mrb[0].mxu0 %v208
    %v276 = vpop.f32.mrb[0].mxu0
    %v277 = vadd.f32 0.0, %v276
    %v278 = vpop.f32.mrb[0].mxu0
    %279 = vdwg.mxu0
    %v281 = vrot.slane %v277, 6
    %v283 = vadd.f32 %v119, %v281
    %v284 = vtanh.pop %v283
    %v286 = vrot.slane %v284, 2
    %v287 = vsel %vm127, %v286, 0
    %289 = vmatprep.subr.mxu0 0.0
    %290 = vmatpush1.msra.mxu0 %v122
    %291 = vmatprep.subr.mxu0 0.0
    %292 = vmatpush1.msra.mxu0 %v123
    %293 = vmatprep.subr.mxu0 0.0
    %294 = vmatpush1.msra.mxu0 %v124
    %295 = vmatprep.subr.mxu0 0.0
    %296 = vmatpush1.msra.mxu0 %v125
    %297 = vmatprep.subr.mxu0 0.0
    %298 = vmatpush1.msra.mxu0 0.0
    %299 = vmatprep.subr.mxu0 0.0
    %300 = vmatpush1.msra.mxu0 0.0
    %301 = vmatprep.subr.mxu0 0.0
    %302 = vmatpush1.msra.mxu0 0.0
    %303 = vmatprep.subr.mxu0 0.0
    %304 = vmatpush1.msra.mxu0 0.0
    %305 = vmatprep.subr.mxu0 0.0
    %306 = vmatpush1.msra.mxu0 0.0
    %307 = vmatprep.subr.mxu0 0.0
    %308 = vmatpush1.msra.mxu0 0.0
    %309 = vmatprep.subr.mxu0 0.0
    %310 = vmatpush1.msra.mxu0 0.0
    %311 = vmatprep.subr.mxu0 0.0
    %312 = vmatpush1.msra.mxu0 0.0
    %313 = vmatprep.subr.mxu0 0.0
    %314 = vmatpush1.msra.mxu0 0.0
    %315 = vmatprep.subr.mxu0 0.0
    %316 = vmatpush1.msra.mxu0 0.0
    %317 = vmatprep.subr.mxu0 0.0
    %318 = vmatpush1.msra.mxu0 0.0
    %319 = vmatprep.subr.mxu0 0.0
    %320 = vmatpush1.msra.mxu0 0.0
    %321 = vmatprep.subr.mxu0 0.0
    %322 = vmatpush1.msra.mxu0 0.0
    %323 = vmatprep.subr.mxu0 0.0
    %324 = vmatpush1.msra.mxu0 0.0
    %325 = vmatprep.subr.mxu0 0.0
    %326 = vmatpush1.msra.mxu0 0.0
    %327 = vmatprep.subr.mxu0 0.0
    %328 = vmatpush1.msra.mxu0 0.0
    %329 = vmatprep.subr.mxu0 0.0
    %330 = vmatpush1.msra.mxu0 0.0
    %331 = vmatprep.subr.mxu0 0.0
    %332 = vmatpush1.msra.mxu0 0.0
    %333 = vmatprep.subr.mxu0 0.0
    %334 = vmatpush1.msra.mxu0 0.0
    %335 = vmatprep.subr.mxu0 0.0
    %336 = vmatpush1.msra.mxu0 0.0
    %337 = vmatprep.subr.mxu0 0.0
    %338 = vmatpush1.msra.mxu0 0.0
    %339 = vmatprep.subr.mxu0 0.0
    %340 = vmatpush1.msra.mxu0 0.0
    %341 = vmatprep.subr.mxu0 0.0
    %342 = vmatpush1.msra.mxu0 0.0
    %343 = vmatprep.subr.mxu0 0.0
    %344 = vmatpush1.msra.mxu0 0.0
    %345 = vmatprep.subr.mxu0 0.0
    %346 = vmatpush1.msra.mxu0 0.0
    %347 = vmatprep.subr.mxu0 0.0
    %348 = vmatpush1.msra.mxu0 0.0
    %349 = vmatprep.subr.mxu0 0.0
    %350 = vmatpush1.msra.mxu0 0.0
    %351 = vmatprep.subr.mxu0 0.0
    %352 = vmatpush1.msra.mxu0 0.0
    %353 = vmatprep.mubr.f32.mxu0 0.0
    %354 = vmatmul.mubr.f32.gmra.mrb[0].mxu0 %v287
    %v355 = vpop.f32.mrb[0].mxu0
    %v356 = vadd.f32 0.0, %v355
    %v357 = vpop.f32.mrb[0].mxu0
    %358 = vdwg.mxu0
    %v360 = vrot.slane %v356, 5
    %v362 = vadd.f32 %v119, %v360
    %v363 = vtanh.pop %v362
    %v365 = vrot.slane %v363, 3
    %v366 = vsel %vm127, %v365, 0
    %368 = vmatprep.subr.mxu0 0.0
    %369 = vmatpush1.msra.mxu0 %v122
    %370 = vmatprep.subr.mxu0 0.0
    %371 = vmatpush1.msra.mxu0 %v123
    %372 = vmatprep.subr.mxu0 0.0
    %373 = vmatpush1.msra.mxu0 %v124
    %374 = vmatprep.subr.mxu0 0.0
    %375 = vmatpush1.msra.mxu0 %v125
    %376 = vmatprep.subr.mxu0 0.0
    %377 = vmatpush1.msra.mxu0 0.0
    %378 = vmatprep.subr.mxu0 0.0
    %379 = vmatpush1.msra.mxu0 0.0
    %380 = vmatprep.subr.mxu0 0.0
    %381 = vmatpush1.msra.mxu0 0.0
    %382 = vmatprep.subr.mxu0 0.0
    %383 = vmatpush1.msra.mxu0 0.0
    %384 = vmatprep.subr.mxu0 0.0
    %385 = vmatpush1.msra.mxu0 0.0
    %386 = vmatprep.subr.mxu0 0.0
    %387 = vmatpush1.msra.mxu0 0.0
    %388 = vmatprep.subr.mxu0 0.0
    %389 = vmatpush1.msra.mxu0 0.0
    %390 = vmatprep.subr.mxu0 0.0
    %391 = vmatpush1.msra.mxu0 0.0
    %392 = vmatprep.subr.mxu0 0.0
    %393 = vmatpush1.msra.mxu0 0.0
    %394 = vmatprep.subr.mxu0 0.0
    %395 = vmatpush1.msra.mxu0 0.0
    %396 = vmatprep.subr.mxu0 0.0
    %397 = vmatpush1.msra.mxu0 0.0
    %398 = vmatprep.subr.mxu0 0.0
    %399 = vmatpush1.msra.mxu0 0.0
    %400 = vmatprep.subr.mxu0 0.0
    %401 = vmatpush1.msra.mxu0 0.0
    %402 = vmatprep.subr.mxu0 0.0
    %403 = vmatpush1.msra.mxu0 0.0
    %404 = vmatprep.subr.mxu0 0.0
    %405 = vmatpush1.msra.mxu0 0.0
    %406 = vmatprep.subr.mxu0 0.0
    %407 = vmatpush1.msra.mxu0 0.0
    %408 = vmatprep.subr.mxu0 0.0
    %409 = vmatpush1.msra.mxu0 0.0
    %410 = vmatprep.subr.mxu0 0.0
    %411 = vmatpush1.msra.mxu0 0.0
    %412 = vmatprep.subr.mxu0 0.0
    %413 = vmatpush1.msra.mxu0 0.0
    %414 = vmatprep.subr.mxu0 0.0
    %415 = vmatpush1.msra.mxu0 0.0
    %416 = vmatprep.subr.mxu0 0.0
    %417 = vmatpush1.msra.mxu0 0.0
    %418 = vmatprep.subr.mxu0 0.0
    %419 = vmatpush1.msra.mxu0 0.0
    %420 = vmatprep.subr.mxu0 0.0
    %421 = vmatpush1.msra.mxu0 0.0
    %422 = vmatprep.subr.mxu0 0.0
    %423 = vmatpush1.msra.mxu0 0.0
    %424 = vmatprep.subr.mxu0 0.0
    %425 = vmatpush1.msra.mxu0 0.0
    %426 = vmatprep.subr.mxu0 0.0
    %427 = vmatpush1.msra.mxu0 0.0
    %428 = vmatprep.subr.mxu0 0.0
    %429 = vmatpush1.msra.mxu0 0.0
    %430 = vmatprep.subr.mxu0 0.0
    %431 = vmatpush1.msra.mxu0 0.0
    %432 = vmatprep.mubr.f32.mxu0 0.0
    %433 = vmatmul.mubr.f32.gmra.mrb[0].mxu0 %v366
    %v434 = vpop.f32.mrb[0].mxu0
    %v435 = vadd.f32 0.0, %v434
    %v436 = vpop.f32.mrb[0].mxu0
    %437 = vdwg.mxu0
    %v439 = vrot.slane %v435, 4
    %v441 = vadd.f32 %v119, %v439
    %v442 = vtanh.pop %v441
    %v444 = vrot.slane %v442, 4
    %v445 = vsel %vm127, %v444, 0
    %447 = vmatprep.subr.mxu0 0.0
    %448 = vmatpush1.msra.mxu0 %v122
    %449 = vmatprep.subr.mxu0 0.0
    %450 = vmatpush1.msra.mxu0 %v123
    %451 = vmatprep.subr.mxu0 0.0
    %452 = vmatpush1.msra.mxu0 %v124
    %453 = vmatprep.subr.mxu0 0.0
    %454 = vmatpush1.msra.mxu0 %v125
    %455 = vmatprep.subr.mxu0 0.0
    %456 = vmatpush1.msra.mxu0 0.0
    %457 = vmatprep.subr.mxu0 0.0
    %458 = vmatpush1.msra.mxu0 0.0
    %459 = vmatprep.subr.mxu0 0.0
    %460 = vmatpush1.msra.mxu0 0.0
    %461 = vmatprep.subr.mxu0 0.0
    %462 = vmatpush1.msra.mxu0 0.0
    %463 = vmatprep.subr.mxu0 0.0
    %464 = vmatpush1.msra.mxu0 0.0
    %465 = vmatprep.subr.mxu0 0.0
    %466 = vmatpush1.msra.mxu0 0.0
    %467 = vmatprep.subr.mxu0 0.0
    %468 = vmatpush1.msra.mxu0 0.0
    %469 = vmatprep.subr.mxu0 0.0
    %470 = vmatpush1.msra.mxu0 0.0
    %471 = vmatprep.subr.mxu0 0.0
    %472 = vmatpush1.msra.mxu0 0.0
    %473 = vmatprep.subr.mxu0 0.0
    %474 = vmatpush1.msra.mxu0 0.0
    %475 = vmatprep.subr.mxu0 0.0
    %476 = vmatpush1.msra.mxu0 0.0
    %477 = vmatprep.subr.mxu0 0.0
    %478 = vmatpush1.msra.mxu0 0.0
    %479 = vmatprep.subr.mxu0 0.0
    %480 = vmatpush1.msra.mxu0 0.0
    %481 = vmatprep.subr.mxu0 0.0
    %482 = vmatpush1.msra.mxu0 0.0
    %483 = vmatprep.subr.mxu0 0.0
    %484 = vmatpush1.msra.mxu0 0.0
    %485 = vmatprep.subr.mxu0 0.0
    %486 = vmatpush1.msra.mxu0 0.0
    %487 = vmatprep.subr.mxu0 0.0
    %488 = vmatpush1.msra.mxu0 0.0
    %489 = vmatprep.subr.mxu0 0.0
    %490 = vmatpush1.msra.mxu0 0.0
    %491 = vmatprep.subr.mxu0 0.0
    %492 = vmatpush1.msra.mxu0 0.0
    %493 = vmatprep.subr.mxu0 0.0
    %494 = vmatpush1.msra.mxu0 0.0
    %495 = vmatprep.subr.mxu0 0.0
    %496 = vmatpush1.msra.mxu0 0.0
    %497 = vmatprep.subr.mxu0 0.0
    %498 = vmatpush1.msra.mxu0 0.0
    %499 = vmatprep.subr.mxu0 0.0
    %500 = vmatpush1.msra.mxu0 0.0
    %501 = vmatprep.subr.mxu0 0.0
    %502 = vmatpush1.msra.mxu0 0.0
    %503 = vmatprep.subr.mxu0 0.0
    %504 = vmatpush1.msra.mxu0 0.0
    %505 = vmatprep.subr.mxu0 0.0
    %506 = vmatpush1.msra.mxu0 0.0
    %507 = vmatprep.subr.mxu0 0.0
    %508 = vmatpush1.msra.mxu0 0.0
    %509 = vmatprep.subr.mxu0 0.0
    %510 = vmatpush1.msra.mxu0 0.0
    %511 = vmatprep.mubr.f32.mxu0 0.0
    %512 = vmatmul.mubr.f32.gmra.mrb[0].mxu0 %v445
    %v513 = vpop.f32.mrb[0].mxu0
    %v514 = vadd.f32 0.0, %v513
    %v515 = vpop.f32.mrb[0].mxu0
    %516 = vdwg.mxu0
    %v518 = vrot.slane %v514, 3
    %v520 = vadd.f32 %v119, %v518
    %v521 = vtanh.pop %v520
    %v523 = vrot.slane %v521, 5
    %v524 = vsel %vm127, %v523, 0
    %526 = vmatprep.subr.mxu0 0.0
    %527 = vmatpush1.msra.mxu0 %v122
    %528 = vmatprep.subr.mxu0 0.0
    %529 = vmatpush1.msra.mxu0 %v123
    %530 = vmatprep.subr.mxu0 0.0
    %531 = vmatpush1.msra.mxu0 %v124
    %532 = vmatprep.subr.mxu0 0.0
    %533 = vmatpush1.msra.mxu0 %v125
    %534 = vmatprep.subr.mxu0 0.0
    %535 = vmatpush1.msra.mxu0 0.0
    %536 = vmatprep.subr.mxu0 0.0
    %537 = vmatpush1.msra.mxu0 0.0
    %538 = vmatprep.subr.mxu0 0.0
    %539 = vmatpush1.msra.mxu0 0.0
    %540 = vmatprep.subr.mxu0 0.0
    %541 = vmatpush1.msra.mxu0 0.0
    %542 = vmatprep.subr.mxu0 0.0
    %543 = vmatpush1.msra.mxu0 0.0
    %544 = vmatprep.subr.mxu0 0.0
    %545 = vmatpush1.msra.mxu0 0.0
    %546 = vmatprep.subr.mxu0 0.0
    %547 = vmatpush1.msra.mxu0 0.0
    %548 = vmatprep.subr.mxu0 0.0
    %549 = vmatpush1.msra.mxu0 0.0
    %550 = vmatprep.subr.mxu0 0.0
    %551 = vmatpush1.msra.mxu0 0.0
    %552 = vmatprep.subr.mxu0 0.0
    %553 = vmatpush1.msra.mxu0 0.0
    %554 = vmatprep.subr.mxu0 0.0
    %555 = vmatpush1.msra.mxu0 0.0
    %556 = vmatprep.subr.mxu0 0.0
    %557 = vmatpush1.msra.mxu0 0.0
    %558 = vmatprep.subr.mxu0 0.0
    %559 = vmatpush1.msra.mxu0 0.0
    %560 = vmatprep.subr.mxu0 0.0
    %561 = vmatpush1.msra.mxu0 0.0
    %562 = vmatprep.subr.mxu0 0.0
    %563 = vmatpush1.msra.mxu0 0.0
    %564 = vmatprep.subr.mxu0 0.0
    %565 = vmatpush1.msra.mxu0 0.0
    %566 = vmatprep.subr.mxu0 0.0
    %567 = vmatpush1.msra.mxu0 0.0
    %568 = vmatprep.subr.mxu0 0.0
    %569 = vmatpush1.msra.mxu0 0.0
    %570 = vmatprep.subr.mxu0 0.0
    %571 = vmatpush1.msra.mxu0 0.0
    %572 = vmatprep.subr.mxu0 0.0
    %573 = vmatpush1.msra.mxu0 0.0
    %574 = vmatprep.subr.mxu0 0.0
    %575 = vmatpush1.msra.mxu0 0.0
    %576 = vmatprep.subr.mxu0 0.0
    %577 = vmatpush1.msra.mxu0 0.0
    %578 = vmatprep.subr.mxu0 0.0
    %579 = vmatpush1.msra.mxu0 0.0
    %580 = vmatprep.subr.mxu0 0.0
    %581 = vmatpush1.msra.mxu0 0.0
    %582 = vmatprep.subr.mxu0 0.0
    %583 = vmatpush1.msra.mxu0 0.0
    %584 = vmatprep.subr.mxu0 0.0
    %585 = vmatpush1.msra.mxu0 0.0
    %586 = vmatprep.subr.mxu0 0.0
    %587 = vmatpush1.msra.mxu0 0.0
    %588 = vmatprep.subr.mxu0 0.0
    %589 = vmatpush1.msra.mxu0 0.0
    %590 = vmatprep.mubr.f32.mxu0 0.0
    %591 = vmatmul.mubr.f32.gmra.mrb[0].mxu0 %v524
    %v592 = vpop.f32.mrb[0].mxu0
    %v593 = vadd.f32 0.0, %v592
    %v594 = vpop.f32.mrb[0].mxu0
    %595 = vdwg.mxu0
    %v597 = vrot.slane %v593, 2
    %v599 = vadd.f32 %v119, %v597
    %v600 = vtanh.pop %v599
    %v602 = vrot.slane %v600, 6
    %v603 = vsel %vm127, %v602, 0
    %605 = vmatprep.subr.mxu0 0.0
    %606 = vmatpush1.msra.mxu0 %v122
    %607 = vmatprep.subr.mxu0 0.0
    %608 = vmatpush1.msra.mxu0 %v123
    %609 = vmatprep.subr.mxu0 0.0
    %610 = vmatpush1.msra.mxu0 %v124
    %611 = vmatprep.subr.mxu0 0.0
    %612 = vmatpush1.msra.mxu0 %v125
    %613 = vmatprep.subr.mxu0 0.0
    %614 = vmatpush1.msra.mxu0 0.0
    %615 = vmatprep.subr.mxu0 0.0
    %616 = vmatpush1.msra.mxu0 0.0
    %617 = vmatprep.subr.mxu0 0.0
    %618 = vmatpush1.msra.mxu0 0.0
    %619 = vmatprep.subr.mxu0 0.0
    %620 = vmatpush1.msra.mxu0 0.0
    %621 = vmatprep.subr.mxu0 0.0
    %622 = vmatpush1.msra.mxu0 0.0
    %623 = vmatprep.subr.mxu0 0.0
    %624 = vmatpush1.msra.mxu0 0.0
    %625 = vmatprep.subr.mxu0 0.0
    %626 = vmatpush1.msra.mxu0 0.0
    %627 = vmatprep.subr.mxu0 0.0
    %628 = vmatpush1.msra.mxu0 0.0
    %629 = vmatprep.subr.mxu0 0.0
    %630 = vmatpush1.msra.mxu0 0.0
    %631 = vmatprep.subr.mxu0 0.0
    %632 = vmatpush1.msra.mxu0 0.0
    %633 = vmatprep.subr.mxu0 0.0
    %634 = vmatpush1.msra.mxu0 0.0
    %635 = vmatprep.subr.mxu0 0.0
    %636 = vmatpush1.msra.mxu0 0.0
    %637 = vmatprep.subr.mxu0 0.0
    %638 = vmatpush1.msra.mxu0 0.0
    %639 = vmatprep.subr.mxu0 0.0
    %640 = vmatpush1.msra.mxu0 0.0
    %641 = vmatprep.subr.mxu0 0.0
    %642 = vmatpush1.msra.mxu0 0.0
    %643 = vmatprep.subr.mxu0 0.0
    %644 = vmatpush1.msra.mxu0 0.0
    %645 = vmatprep.subr.mxu0 0.0
    %646 = vmatpush1.msra.mxu0 0.0
    %647 = vmatprep.subr.mxu0 0.0
    %648 = vmatpush1.msra.mxu0 0.0
    %649 = vmatprep.subr.mxu0 0.0
    %650 = vmatpush1.msra.mxu0 0.0
    %651 = vmatprep.subr.mxu0 0.0
    %652 = vmatpush1.msra.mxu0 0.0
    %653 = vmatprep.subr.mxu0 0.0
    %654 = vmatpush1.msra.mxu0 0.0
    %655 = vmatprep.subr.mxu0 0.0
    %656 = vmatpush1.msra.mxu0 0.0
    %657 = vmatprep.subr.mxu0 0.0
    %658 = vmatpush1.msra.mxu0 0.0
    %659 = vmatprep.subr.mxu0 0.0
    %660 = vmatpush1.msra.mxu0 0.0
    %661 = vmatprep.subr.mxu0 0.0
    %662 = vmatpush1.msra.mxu0 0.0
    %663 = vmatprep.subr.mxu0 0.0
    %664 = vmatpush1.msra.mxu0 0.0
    %665 = vmatprep.subr.mxu0 0.0
    %666 = vmatpush1.msra.mxu0 0.0
    %667 = vmatprep.subr.mxu0 0.0
    %668 = vmatpush1.msra.mxu0 0.0
    %669 = vmatprep.mubr.f32.mxu0 0.0
    %670 = vmatmul.mubr.f32.gmra.mrb[0].mxu0 %v603
    %v671 = vpop.f32.mrb[0].mxu0
    %v672 = vadd.f32 0.0, %v671
    %v673 = vpop.f32.mrb[0].mxu0
    %674 = vdwg.mxu0
    %v676 = vrot.slane %v672, 1
    %v678 = vadd.f32 %v119, %v676
    %v679 = vtanh.pop %v678
    %v680 = vld [vmem:[%s4] sm:$0xff]
    %v681 = vld [vmem:[%s4 + $0x8] sm:$0xff]
    %v682 = vld [vmem:[%s4 + $0x10] sm:$0xff]
    %v683 = vld [vmem:[%s4 + $0x18] sm:$0xff]
    %v684 = vld [vmem:[%s5] sm:$0x1]
    %v686 = vrot.slane %v679, 7
    %v687 = vsel %vm127, %v686, 0
    %689 = vmatprep.subr.mxu0 0.0
    %690 = vmatpush1.msra.mxu0 %v680
    %691 = vmatprep.subr.mxu0 0.0
    %692 = vmatpush1.msra.mxu0 %v681
    %693 = vmatprep.subr.mxu0 0.0
    %694 = vmatpush1.msra.mxu0 %v682
    %695 = vmatprep.subr.mxu0 0.0
    %696 = vmatpush1.msra.mxu0 %v683
    %697 = vmatprep.subr.mxu0 0.0
    %698 = vmatpush1.msra.mxu0 0.0
    %699 = vmatprep.subr.mxu0 0.0
    %700 = vmatpush1.msra.mxu0 0.0
    %701 = vmatprep.subr.mxu0 0.0
    %702 = vmatpush1.msra.mxu0 0.0
    %703 = vmatprep.subr.mxu0 0.0
    %704 = vmatpush1.msra.mxu0 0.0
    %705 = vmatprep.subr.mxu0 0.0
    %706 = vmatpush1.msra.mxu0 0.0
    %707 = vmatprep.subr.mxu0 0.0
    %708 = vmatpush1.msra.mxu0 0.0
    %709 = vmatprep.subr.mxu0 0.0
    %710 = vmatpush1.msra.mxu0 0.0
    %711 = vmatprep.subr.mxu0 0.0
    %712 = vmatpush1.msra.mxu0 0.0
    %713 = vmatprep.subr.mxu0 0.0
    %714 = vmatpush1.msra.mxu0 0.0
    %715 = vmatprep.subr.mxu0 0.0
    %716 = vmatpush1.msra.mxu0 0.0
    %717 = vmatprep.subr.mxu0 0.0
    %718 = vmatpush1.msra.mxu0 0.0
    %719 = vmatprep.subr.mxu0 0.0
    %720 = vmatpush1.msra.mxu0 0.0
    %721 = vmatprep.subr.mxu0 0.0
    %722 = vmatpush1.msra.mxu0 0.0
    %723 = vmatprep.subr.mxu0 0.0
    %724 = vmatpush1.msra.mxu0 0.0
    %725 = vmatprep.subr.mxu0 0.0
    %726 = vmatpush1.msra.mxu0 0.0
    %727 = vmatprep.subr.mxu0 0.0
    %728 = vmatpush1.msra.mxu0 0.0
    %729 = vmatprep.subr.mxu0 0.0
    %730 = vmatpush1.msra.mxu0 0.0
    %731 = vmatprep.subr.mxu0 0.0
    %732 = vmatpush1.msra.mxu0 0.0
    %733 = vmatprep.subr.mxu0 0.0
    %734 = vmatpush1.msra.mxu0 0.0
    %735 = vmatprep.subr.mxu0 0.0
    %736 = vmatpush1.msra.mxu0 0.0
    %737 = vmatprep.subr.mxu0 0.0
    %738 = vmatpush1.msra.mxu0 0.0
    %739 = vmatprep.subr.mxu0 0.0
    %740 = vmatpush1.msra.mxu0 0.0
    %741 = vmatprep.subr.mxu0 0.0
    %742 = vmatpush1.msra.mxu0 0.0
    %743 = vmatprep.subr.mxu0 0.0
    %744 = vmatpush1.msra.mxu0 0.0
    %745 = vmatprep.subr.mxu0 0.0
    %746 = vmatpush1.msra.mxu0 0.0
    %747 = vmatprep.subr.mxu0 0.0
    %748 = vmatpush1.msra.mxu0 0.0
    %749 = vmatprep.subr.mxu0 0.0
    %750 = vmatpush1.msra.mxu0 0.0
    %751 = vmatprep.subr.mxu0 0.0
    %752 = vmatpush1.msra.mxu0 0.0
    %753 = vmatprep.mubr.f32.mxu0 0.0
    %754 = vmatmul.mubr.f32.gmra.mrb[0].mxu0 %v687
    %v755 = vpop.f32.mrb[0].mxu0
    %v756 = vadd.f32 %v684, %v755
    %v757 = vpop.f32.mrb[0].mxu0
    %758 = vdwg.mxu0
    %vm759 = vcmask 32768
    %v760 = vsel %vm759, %v756, -inf
    %761 = vmax.xlane.f32.xlu0 %v760
    %v762 = vpop.xlane.xlu0 %761
    %v763 = vsub.f32 %v756, %v762
    %v764 = vmul.f32 %v763, 1.442695
    %v765 = vpow.pop %v764
    %v766 = vsel %vm759, %v765, 0.0
    %767 = vadd.xlane.f32.xlu0 %v766
    %v768 = vpop.xlane.xlu0 %767
    %v769 = vrcp.pop %v768
    %v770 = vmul.f32 %v765, %v769
    %771 = vst.msk [vmem:[#allocation5] sm:$0x1] %vm759, %v770
    // Predicated region
    $region30: #{tpu_custom_call.1} parent=1 // pred_check
      _
    $region31: #{tpu_custom_call.1} parent=1 // pred_check_branch
      %773 = sbr.rel (0) target = $region33
    $region32: #{tpu_custom_call.1} parent=1 // pred_region
      %s775 = ssub.s32 16, 16
      %776 = vsyncadd [#allocation4], %s775
      %s778 = sshll.u32 [#allocation5], 4
      %s779 = int_to_ptr.vmem [resolvable:$true] %s778
      %781 = dma.vmem_to_hbm [thread:$0]  %s779, 16, %s6, [#allocation4]
    $region33: #{tpu_custom_call.1} parent=1 // pred_fallthru
      _
    // Predicated region
    $region34: #{tpu_custom_call.1} parent=1 // pred_check
      _
    $region35: #{tpu_custom_call.1} parent=1 // pred_check_branch
      %783 = sbr.rel (0) target = $region37
    $region36: #{tpu_custom_call.1} parent=1 // pred_region
      %784 = dma.done [#allocation4], 16
    $region37: #{tpu_custom_call.1} parent=1 // pred_fallthru
      _
    %785 = vsyncpa [#allocation3], 1
    %786 = vsyncpa [#allocation4], 1

</llo_original>
